<compile_context>
chip_gen: v7x
topology: tpu7x:2x2x1
jax: 0.10.0
libtpu: 0.0.40
codegen_flags: <defaults>
</compile_context>

<pallas_src>
import functools

import jax
import jax.numpy as jnp
from jax.experimental import pallas as pl
from jax.experimental.pallas import tpu as pltpu


def depthnet_kernel(x_ref, w1_ref, b1_ref, w2_ref, b2_ref, w3_ref, b3_ref, o_ref):
    # x_ref: (1, C, TN) tile of seeds, N on the lane axis.
    # wK_ref: (out, in) weights (PyTorch Conv1d layout, k=1 squeezed).
    # bK_ref: (out, 1) biases (f32).
    x = x_ref[0].astype(w1_ref.dtype)                                   # (C, TN)
    h1 = jnp.dot(w1_ref[...], x, preferred_element_type=jnp.float32) + b1_ref[...]
    h1 = jnp.maximum(h1, 0.0).astype(w2_ref.dtype)                      # (C, TN)
    h2 = jnp.dot(w2_ref[...], h1, preferred_element_type=jnp.float32) + b2_ref[...]
    h2 = jnp.maximum(h2, 0.0).astype(w3_ref.dtype)                      # (2C, TN)
    out = jnp.dot(w3_ref[...], h2, preferred_element_type=jnp.float32) + b3_ref[...]
    out = jnp.maximum(out, 0.0)                                         # (out_dim, TN)
    o_ref[0] = out.astype(o_ref.dtype)


@functools.partial(jax.jit, static_argnames=("tile_n", "compute_dtype"))
def depthnet_forward(seed_features, params, *, tile_n=512, compute_dtype=jnp.bfloat16):
    """seed_features: (B, C, N) float32. Returns grasp_depth_pred: (B, N, out_dim)."""
    w1, b1, w2, b2, w3, b3 = params          # weights in (out, in) layout
    B, C, N = seed_features.shape
    hid = w2.shape[0]
    out_dim = w3.shape[0]

    # Clamp the seed tile to a lane multiple and to (rounded-up) N; pad N so any
    # B*num_seed works without shrinking the tile (no hard divisibility assert).
    tile_n = max(128, (tile_n // 128) * 128)
    tile_n = min(tile_n, pl.cdiv(N, 128) * 128)
    n_pad = pl.cdiv(N, tile_n) * tile_n
    if n_pad != N:
        seed_features = jnp.pad(seed_features, ((0, 0), (0, 0), (0, n_pad - N)))

    # Weights in the compute dtype (bf16 halves MXU ingest cost on v6e/v7x);
    # biases stay f32 and are added after the f32-accumulated matmul.
    w1c = w1.astype(compute_dtype)
    w2c = w2.astype(compute_dtype)
    w3c = w3.astype(compute_dtype)
    b1r = b1.astype(jnp.float32).reshape(C, 1)
    b2r = b2.astype(jnp.float32).reshape(hid, 1)
    b3r = b3.astype(jnp.float32).reshape(out_dim, 1)

    grid = (B, n_pad // tile_n)

    out = pl.pallas_call(
        depthnet_kernel,
        out_shape=jax.ShapeDtypeStruct((B, out_dim, n_pad), seed_features.dtype),
        grid_spec=pltpu.PrefetchScalarGridSpec(
            num_scalar_prefetch=0,
            grid=grid,
            in_specs=[
                # seed tile: batch b, all channels, lane-dense chunk of N
                pl.BlockSpec((1, C, tile_n), lambda b, n: (b, 0, n)),
                # grid-invariant weights / biases (DMA'd once, reused every step)
                pl.BlockSpec((C, C), lambda b, n: (0, 0)),          # W1
                pl.BlockSpec((C, 1), lambda b, n: (0, 0)),          # b1
                pl.BlockSpec((hid, C), lambda b, n: (0, 0)),        # W2
                pl.BlockSpec((hid, 1), lambda b, n: (0, 0)),        # b2
                pl.BlockSpec((out_dim, hid), lambda b, n: (0, 0)),  # W3
                pl.BlockSpec((out_dim, 1), lambda b, n: (0, 0)),    # b3
            ],
            # lane-dense output store: (out_dim, tile_n) block of (B, out_dim, N)
            out_specs=pl.BlockSpec((1, out_dim, tile_n), lambda b, n: (b, 0, n)),
        ),
        compiler_params=pltpu.CompilerParams(
            dimension_semantics=("parallel", "parallel"),
            vmem_limit_bytes=32 * 1024 * 1024,
        ),
    )(seed_features, w1c, b1r, w2c, b2r, w3c, b3r)

    # Cheap final transpose on the small (B, out_dim, N) output -> (B, N, out_dim),
    # matching PyTorch's depth_pred.transpose(1, 2).
    return jnp.transpose(out[:, :, :N], (0, 2, 1))


def init_params(key, seed_feature_dim, out_dim):
    """Deterministic synthetic parameters in the PyTorch Conv1d (out, in) layout."""
    C = seed_feature_dim
    ks = jax.random.split(key, 6)
    w1 = jax.random.normal(ks[0], (C, C), jnp.float32) * (1.0 / jnp.sqrt(C))
    b1 = jax.random.normal(ks[1], (C,), jnp.float32) * 0.01
    w2 = jax.random.normal(ks[2], (2 * C, C), jnp.float32) * (1.0 / jnp.sqrt(C))
    b2 = jax.random.normal(ks[3], (2 * C,), jnp.float32) * 0.01
    w3 = jax.random.normal(ks[4], (out_dim, 2 * C), jnp.float32) * (1.0 / jnp.sqrt(2 * C))
    b3 = jax.random.normal(ks[5], (out_dim,), jnp.float32) * 0.01
    return (w1, b1, w2, b2, w3, b3)


def depthnet_reference(seed_features, params):
    """Pure-JAX reference of the PyTorch forward (for correctness check)."""
    w1, b1, w2, b2, w3, b3 = params
    h1 = jax.nn.relu(jnp.einsum("oc,bcn->bon", w1, seed_features) + b1[None, :, None])
    h2 = jax.nn.relu(jnp.einsum("oc,bcn->bon", w2, h1) + b2[None, :, None])
    d = jax.nn.relu(jnp.einsum("oc,bcn->bon", w3, h2) + b3[None, :, None])
    return jnp.transpose(d, (0, 2, 1))  # (B, N, out_dim)


if __name__ == "__main__":
    key = jax.random.PRNGKey(0)
    k_in, k_par = jax.random.split(key)

    B = 2
    seed_feature_dim = 32   # self.in_dim
    out_dim = 8             # self.out_dim
    num_seed = 256          # N (multiple of 128 -> no padding; 2 parallel grid steps)

    seed_features = jax.random.normal(
        k_in, (B, seed_feature_dim, num_seed), jnp.float32
    )
    params = init_params(k_par, seed_feature_dim, out_dim)
    ref = depthnet_reference(seed_features, params)

    # end_points dict semantics: forward just stores 'grasp_depth_pred'
    end_points = {}

    # Exact-precision path (f32 weights) for the correctness check.
    pred_f32 = depthnet_forward(
        seed_features, params, tile_n=512, compute_dtype=jnp.float32
    )
    pred_f32 = jax.block_until_ready(pred_f32)
    assert pred_f32.shape == (B, num_seed, out_dim)
    assert jnp.allclose(pred_f32, ref, atol=1e-4, rtol=1e-4)

    # Production path: bf16 weights/activations, f32 accumulation.
    pred_bf16 = depthnet_forward(
        seed_features, params, tile_n=512, compute_dtype=jnp.bfloat16
    )
    pred_bf16 = jax.block_until_ready(pred_bf16)
    assert pred_bf16.shape == (B, num_seed, out_dim)
    assert jnp.max(jnp.abs(pred_bf16 - ref)) < 0.1  # loose: bf16 rounding only

    end_points["grasp_depth_pred"] = pred_f32

    print("KERNEL_OK")
</pallas_src>

<mosaic_0001>
module attributes {stable_mosaic.version = 11 : i64} {
  func.func @depthnet_kernel(%arg0: i32, %arg1: i32, %arg2: memref<1x32x256xf32, #tpu.memory_space<vmem>>, %arg3: memref<32x32xf32, #tpu.memory_space<vmem>>, %arg4: memref<32x1xf32, #tpu.memory_space<vmem>>, %arg5: memref<64x32xf32, #tpu.memory_space<vmem>>, %arg6: memref<64x1xf32, #tpu.memory_space<vmem>>, %arg7: memref<8x64xf32, #tpu.memory_space<vmem>>, %arg8: memref<8x1xf32, #tpu.memory_space<vmem>>, %arg9: memref<1x8x256xf32, #tpu.memory_space<vmem>>) attributes {dimension_semantics = [#tpu.dimension_semantics<parallel>, #tpu.dimension_semantics<parallel>], iteration_bounds = array<i64: 2, 1>, scalar_prefetch = 0 : i64, scratch_operands = 0 : i64, tpu.core_type = #tpu.core_type<tc>, window_params = [{transform_indices = @transform_0, window_bounds = array<i64: 1, 32, 256>}, {pipeline_mode = #tpu.pipeline_mode<synchronous>, transform_indices = @transform_1, window_bounds = array<i64: 32, 32>}, {pipeline_mode = #tpu.pipeline_mode<synchronous>, transform_indices = @transform_2, window_bounds = array<i64: 32, 1>}, {pipeline_mode = #tpu.pipeline_mode<synchronous>, transform_indices = @transform_3, window_bounds = array<i64: 64, 32>}, {pipeline_mode = #tpu.pipeline_mode<synchronous>, transform_indices = @transform_4, window_bounds = array<i64: 64, 1>}, {pipeline_mode = #tpu.pipeline_mode<synchronous>, transform_indices = @transform_5, window_bounds = array<i64: 8, 64>}, {pipeline_mode = #tpu.pipeline_mode<synchronous>, transform_indices = @transform_6, window_bounds = array<i64: 8, 1>}, {transform_indices = @transform_7, window_bounds = array<i64: 1, 8, 256>}]} {
    %c0 = arith.constant 0 : index
    %c0_0 = arith.constant 0 : index
    %c0_1 = arith.constant 0 : index
    %0 = vector.load %arg2[%c0, %c0_0, %c0_1] : memref<1x32x256xf32, #tpu.memory_space<vmem>>, vector<1x32x256xf32>
    %1 = vector.shape_cast %0 : vector<1x32x256xf32> to vector<32x256xf32>
    %c0_2 = arith.constant 0 : index
    %c0_3 = arith.constant 0 : index
    %2 = vector.load %arg3[%c0_2, %c0_3] : memref<32x32xf32, #tpu.memory_space<vmem>>, vector<32x32xf32>
    %cst = arith.constant dense<0.000000e+00> : vector<32x256xf32>
    %3 = tpu.matmul %2, %1, %cst {dimension_numbers = #tpu.dot_dimension_numbers<[1], [0], [0], [1], [0, 0, 1, 1], [], []>} : vector<32x32xf32>, vector<32x256xf32>, vector<32x256xf32> -> vector<32x256xf32>
    %c0_4 = arith.constant 0 : index
    %c0_5 = arith.constant 0 : index
    %4 = vector.load %arg4[%c0_4, %c0_5] : memref<32x1xf32, #tpu.memory_space<vmem>>, vector<32x1xf32>
    %5 = vector.broadcast %4 : vector<32x1xf32> to vector<32x256xf32>
    %6 = arith.addf %3, %5 : vector<32x256xf32>
    %cst_6 = arith.constant 0.000000e+00 : f32
    %7 = vector.broadcast %cst_6 : f32 to vector<32x256xf32>
    %8 = arith.maximumf %6, %7 : vector<32x256xf32>
    %c0_7 = arith.constant 0 : index
    %c0_8 = arith.constant 0 : index
    %9 = vector.load %arg5[%c0_7, %c0_8] : memref<64x32xf32, #tpu.memory_space<vmem>>, vector<64x32xf32>
    %cst_9 = arith.constant dense<0.000000e+00> : vector<64x256xf32>
    %10 = tpu.matmul %9, %8, %cst_9 {dimension_numbers = #tpu.dot_dimension_numbers<[1], [0], [0], [1], [0, 0, 1, 1], [], []>} : vector<64x32xf32>, vector<32x256xf32>, vector<64x256xf32> -> vector<64x256xf32>
    %c0_10 = arith.constant 0 : index
    %c0_11 = arith.constant 0 : index
    %11 = vector.load %arg6[%c0_10, %c0_11] : memref<64x1xf32, #tpu.memory_space<vmem>>, vector<64x1xf32>
    %12 = vector.broadcast %11 : vector<64x1xf32> to vector<64x256xf32>
    %13 = arith.addf %10, %12 : vector<64x256xf32>
    %cst_12 = arith.constant 0.000000e+00 : f32
    %14 = vector.broadcast %cst_12 : f32 to vector<64x256xf32>
    %15 = arith.maximumf %13, %14 : vector<64x256xf32>
    %c0_13 = arith.constant 0 : index
    %c0_14 = arith.constant 0 : index
    %16 = vector.load %arg7[%c0_13, %c0_14] : memref<8x64xf32, #tpu.memory_space<vmem>>, vector<8x64xf32>
    %cst_15 = arith.constant dense<0.000000e+00> : vector<8x256xf32>
    %17 = tpu.matmul %16, %15, %cst_15 {dimension_numbers = #tpu.dot_dimension_numbers<[1], [0], [0], [1], [0, 0, 1, 1], [], []>} : vector<8x64xf32>, vector<64x256xf32>, vector<8x256xf32> -> vector<8x256xf32>
    %c0_16 = arith.constant 0 : index
    %c0_17 = arith.constant 0 : index
    %18 = vector.load %arg8[%c0_16, %c0_17] : memref<8x1xf32, #tpu.memory_space<vmem>>, vector<8x1xf32>
    %19 = vector.broadcast %18 : vector<8x1xf32> to vector<8x256xf32>
    %20 = arith.addf %17, %19 : vector<8x256xf32>
    %cst_18 = arith.constant 0.000000e+00 : f32
    %21 = vector.broadcast %cst_18 : f32 to vector<8x256xf32>
    %22 = arith.maximumf %20, %21 : vector<8x256xf32>
    %c0_19 = arith.constant 0 : index
    %c0_20 = arith.constant 0 : index
    %c0_21 = arith.constant 0 : index
    %23 = vector.load %arg9[%c0_19, %c0_20, %c0_21] : memref<1x8x256xf32, #tpu.memory_space<vmem>>, vector<1x8x256xf32>
    %24 = vector.shape_cast %23 : vector<1x8x256xf32> to vector<8x256xf32>
    %25 = vector.shape_cast %22 : vector<8x256xf32> to vector<1x8x256xf32>
    tpu.vector_store %arg9[%c0_19, %c0_20, %c0_21], %25 {strides = array<i32>} : memref<1x8x256xf32, #tpu.memory_space<vmem>>, vector<1x8x256xf32>,
    return
  }
  func.func @transform_0(%arg0: i32, %arg1: i32) -> (i32, i32, i32) {
    %c0_i32 = arith.constant 0 : i32
    %c0_i32_0 = arith.constant 0 : i32
    return %arg0, %c0_i32, %arg1 : i32, i32, i32
  }
  func.func @transform_1(%arg0: i32, %arg1: i32) -> (i32, i32) {
    %c0_i32 = arith.constant 0 : i32
    %c0_i32_0 = arith.constant 0 : i32
    %c0_i32_1 = arith.constant 0 : i32
    return %c0_i32, %c0_i32_0 : i32, i32
  }
  func.func @transform_2(%arg0: i32, %arg1: i32) -> (i32, i32) {
    %c0_i32 = arith.constant 0 : i32
    %c0_i32_0 = arith.constant 0 : i32
    %c0_i32_1 = arith.constant 0 : i32
    return %c0_i32, %c0_i32_0 : i32, i32
  }
  func.func @transform_3(%arg0: i32, %arg1: i32) -> (i32, i32) {
    %c0_i32 = arith.constant 0 : i32
    %c0_i32_0 = arith.constant 0 : i32
    %c0_i32_1 = arith.constant 0 : i32
    return %c0_i32, %c0_i32_0 : i32, i32
  }
  func.func @transform_4(%arg0: i32, %arg1: i32) -> (i32, i32) {
    %c0_i32 = arith.constant 0 : i32
    %c0_i32_0 = arith.constant 0 : i32
    %c0_i32_1 = arith.constant 0 : i32
    return %c0_i32, %c0_i32_0 : i32, i32
  }
  func.func @transform_5(%arg0: i32, %arg1: i32) -> (i32, i32) {
    %c0_i32 = arith.constant 0 : i32
    %c0_i32_0 = arith.constant 0 : i32
    %c0_i32_1 = arith.constant 0 : i32
    return %c0_i32, %c0_i32_0 : i32, i32
  }
  func.func @transform_6(%arg0: i32, %arg1: i32) -> (i32, i32) {
    %c0_i32 = arith.constant 0 : i32
    %c0_i32_0 = arith.constant 0 : i32
    %c0_i32_1 = arith.constant 0 : i32
    return %c0_i32, %c0_i32_0 : i32, i32
  }
  func.func @transform_7(%arg0: i32, %arg1: i32) -> (i32, i32, i32) {
    %c0_i32 = arith.constant 0 : i32
    %c0_i32_0 = arith.constant 0 : i32
    return %arg0, %c0_i32, %arg1 : i32, i32, i32
  }
}

</mosaic_0001>

<llo_original>
// kernel: depthnet_forward.1
$region0: #{depthnet_forward.1}
  #allocation0 [shape = 'u32[]', space=smem, size = 0x4, offset = 0x4, fixed_abs, tag = 'smem constant byte address 0x4 - core index']
  #allocation1 [shape = 'u32[144,128]{1,0:T(1,128)}', space=vmem, size = 0x12000, scoped, tag = 'internal scratch']
  %s0 = inlined_call_operand.vmem [shape: f32[2,32,256], index: 0, kind: input, shape index: {}]
  %s1 = inlined_call_operand.vmem [shape: f32[32,32], index: 1, kind: input, shape index: {}]
  %s2 = inlined_call_operand.vmem [shape: f32[32,1], index: 2, kind: input, shape index: {}]
  %s3 = inlined_call_operand.vmem [shape: f32[64,32], index: 3, kind: input, shape index: {}]
  %s4 = inlined_call_operand.vmem [shape: f32[64,1], index: 4, kind: input, shape index: {}]
  %s5 = inlined_call_operand.vmem [shape: f32[8,64], index: 5, kind: input, shape index: {}]
  %s6 = inlined_call_operand.vmem [shape: f32[8,1], index: 6, kind: input, shape index: {}]
  %s7 = inlined_call_operand.hbm [shape: f32[2,8,256], index: 7, kind: output, shape index: {}]
  %s8 = sld [smem:[#allocation0]]
  $region61: #{depthnet_forward.1} parent=0
    _
  %s10 = ssub.s32 1, %s8
  %s11 = scalar_select 0, %s10, %s8
  $region1: #{depthnet_forward.1} parent=0
    #allocation2 [shape = 'u8[16384]{0}', space=vmem, size = 0x4000, scoped, tag = 'output window, operand 0']
    #allocation3 [shape = 's32[2]{0}', space=sflag, size = 0x8, scoped, tag = 'scoped memory for depthnet_forward.1']
    %12 = vsyncpa [#allocation3], 0
    %s13 = scalar_lea.sflag [#allocation3], 1
    %14 = vsyncpa %s13, 0
    loop: start=0, step=1, limit=4
    $region2: #{depthnet_forward.1} parent=1 // loop_pre_header
      _
    $region3: #{depthnet_forward.1} parent=1 // loop_header
      %s16 = sphi 0, %s20
      %p17 = scmp.ge.s32.totalorder %s16, 4
      %s23 = sphi 0, %s35
      %s24 = sphi 0, %s31
      %s25 = sphi 0, %s23
      %s26 = sphi 0, %s24
      %s27 = sphi 0, %s25
      %s28 = sphi 0, %s26
      %s40 = sphi 0, %s42
      %s43 = sphi 0, %s40
      %s44 = sphi 0, %s43
      %s60 = sphi 0, %s44
      %s64 = sphi 0, %s64
      %s66 = sphi 0, %s64
      %s67 = sphi 0, %s66
      %s81 = sphi 0, %s67
      %s85 = sphi 0, %s85
      %s87 = sphi 0, %s85
      %s88 = sphi 0, %s87
      %s102 = sphi 0, %s88
      %s106 = sphi 0, %s106
      %s108 = sphi 0, %s106
      %s109 = sphi 0, %s108
      %s123 = sphi 0, %s109
      %s127 = sphi 0, %s127
      %s129 = sphi 0, %s127
      %s130 = sphi 0, %s129
      %s144 = sphi 0, %s130
      %s148 = sphi 0, %s148
      %s150 = sphi 0, %s148
      %s151 = sphi 0, %s150
      %s165 = sphi 0, %s151
      %s169 = sphi 0, %s169
      %s171 = sphi 0, %s169
      %s172 = sphi 0, %s171
      %s186 = sphi 0, %s172
      %s194 = sphi 0, %s196
      %s197 = sphi 0, %s194
      %s198 = sphi 0, %s197
      %s214 = sphi 0, %s198
    $region4: #{depthnet_forward.1} parent=1 // loop_header_branch
      %19 = sbr.rel (%p17) target = $region8
    $region5: #{depthnet_forward.1} parent=1 // loop_body
      %s21 = ssub.s32 %s16, 1
      %s22 = ssub.s32 %s16, 2
      %s29 = sadd.s32 1, %s24
      %p30 = scmp.ge.s32.totalorder %s29, 1
      %s31 = scalar_select %p30, 0, %s29
      %s32 = sadd.s32 1, %s23
      %s33 = scalar_select %p30, %s32, %s23
      %p34 = scmp.ge.s32.totalorder %s33, 2
      %s35 = scalar_select %p34, 0, %s33
      %s36 = ssub.s32 %s23, %s35
      %s37 = ssub.s32 %s24, %s31
      %s38 = sor.u32 %s36, %s37
      %p39 = scmp.eq.s32.totalorder %s38, 0
      %s41 = sadd.s32 %s40, 1
      %s42 = scalar_select %p39, %s40, %s41
      %p45 = pneg %p39
      %p46 = scmp.eq.s32.totalorder %s16, 1
      %p47 = por %p45, %p46
      %p48 = scmp.ne.s32.totalorder %s40, %s43
      %p49 = scmp.eq.s32.totalorder %s16, 0
      %p50 = por %p48, %p49
      %p51 = scmp.ne.s32.totalorder %s40, %s43
      %p52 = scmp.eq.s32.totalorder %s21, 1
      %p53 = por %p51, %p52
      %p54 = scmp.ne.s32.totalorder %s43, %s44
      %p55 = scmp.eq.s32.totalorder %s21, 0
      %p56 = por %p54, %p55
      %p57 = scmp.ne.s32.totalorder %s43, %s44
      %p58 = scmp.eq.s32.totalorder %s22, 1
      %p59 = por %p57, %p58
      %p61 = scmp.ne.s32.totalorder %s44, %s60
      %p62 = scmp.eq.s32.totalorder %s22, 0
      %p63 = por %p61, %p62
      %s65 = sadd.s32 %s64, 1
      %p68 = scmp.eq.s32.totalorder %s16, 1
      %p69 = scmp.ne.s32.totalorder %s64, %s66
      %p70 = scmp.eq.s32.totalorder %s16, 0
      %p71 = por %p69, %p70
      %p72 = scmp.ne.s32.totalorder %s64, %s66
      %p73 = scmp.eq.s32.totalorder %s21, 1
      %p74 = por %p72, %p73
      %p75 = scmp.ne.s32.totalorder %s66, %s67
      %p76 = scmp.eq.s32.totalorder %s21, 0
      %p77 = por %p75, %p76
      %p78 = scmp.ne.s32.totalorder %s66, %s67
      %p79 = scmp.eq.s32.totalorder %s22, 1
      %p80 = por %p78, %p79
      %p82 = scmp.ne.s32.totalorder %s67, %s81
      %p83 = scmp.eq.s32.totalorder %s22, 0
      %p84 = por %p82, %p83
      %s86 = sadd.s32 %s85, 1
      %p89 = scmp.eq.s32.totalorder %s16, 1
      %p90 = scmp.ne.s32.totalorder %s85, %s87
      %p91 = scmp.eq.s32.totalorder %s16, 0
      %p92 = por %p90, %p91
      %p93 = scmp.ne.s32.totalorder %s85, %s87
      %p94 = scmp.eq.s32.totalorder %s21, 1
      %p95 = por %p93, %p94
      %p96 = scmp.ne.s32.totalorder %s87, %s88
      %p97 = scmp.eq.s32.totalorder %s21, 0
      %p98 = por %p96, %p97
      %p99 = scmp.ne.s32.totalorder %s87, %s88
      %p100 = scmp.eq.s32.totalorder %s22, 1
      %p101 = por %p99, %p100
      %p103 = scmp.ne.s32.totalorder %s88, %s102
      %p104 = scmp.eq.s32.totalorder %s22, 0
      %p105 = por %p103, %p104
      %s107 = sadd.s32 %s106, 1
      %p110 = scmp.eq.s32.totalorder %s16, 1
      %p111 = scmp.ne.s32.totalorder %s106, %s108
      %p112 = scmp.eq.s32.totalorder %s16, 0
      %p113 = por %p111, %p112
      %p114 = scmp.ne.s32.totalorder %s106, %s108
      %p115 = scmp.eq.s32.totalorder %s21, 1
      %p116 = por %p114, %p115
      %p117 = scmp.ne.s32.totalorder %s108, %s109
      %p118 = scmp.eq.s32.totalorder %s21, 0
      %p119 = por %p117, %p118
      %p120 = scmp.ne.s32.totalorder %s108, %s109
      %p121 = scmp.eq.s32.totalorder %s22, 1
      %p122 = por %p120, %p121
      %p124 = scmp.ne.s32.totalorder %s109, %s123
      %p125 = scmp.eq.s32.totalorder %s22, 0
      %p126 = por %p124, %p125
      %s128 = sadd.s32 %s127, 1
      %p131 = scmp.eq.s32.totalorder %s16, 1
      %p132 = scmp.ne.s32.totalorder %s127, %s129
      %p133 = scmp.eq.s32.totalorder %s16, 0
      %p134 = por %p132, %p133
      %p135 = scmp.ne.s32.totalorder %s127, %s129
      %p136 = scmp.eq.s32.totalorder %s21, 1
      %p137 = por %p135, %p136
      %p138 = scmp.ne.s32.totalorder %s129, %s130
      %p139 = scmp.eq.s32.totalorder %s21, 0
      %p140 = por %p138, %p139
      %p141 = scmp.ne.s32.totalorder %s129, %s130
      %p142 = scmp.eq.s32.totalorder %s22, 1
      %p143 = por %p141, %p142
      %p145 = scmp.ne.s32.totalorder %s130, %s144
      %p146 = scmp.eq.s32.totalorder %s22, 0
      %p147 = por %p145, %p146
      %s149 = sadd.s32 %s148, 1
      %p152 = scmp.eq.s32.totalorder %s16, 1
      %p153 = scmp.ne.s32.totalorder %s148, %s150
      %p154 = scmp.eq.s32.totalorder %s16, 0
      %p155 = por %p153, %p154
      %p156 = scmp.ne.s32.totalorder %s148, %s150
      %p157 = scmp.eq.s32.totalorder %s21, 1
      %p158 = por %p156, %p157
      %p159 = scmp.ne.s32.totalorder %s150, %s151
      %p160 = scmp.eq.s32.totalorder %s21, 0
      %p161 = por %p159, %p160
      %p162 = scmp.ne.s32.totalorder %s150, %s151
      %p163 = scmp.eq.s32.totalorder %s22, 1
      %p164 = por %p162, %p163
      %p166 = scmp.ne.s32.totalorder %s151, %s165
      %p167 = scmp.eq.s32.totalorder %s22, 0
      %p168 = por %p166, %p167
      %s170 = sadd.s32 %s169, 1
      %p173 = scmp.eq.s32.totalorder %s16, 1
      %p174 = scmp.ne.s32.totalorder %s169, %s171
      %p175 = scmp.eq.s32.totalorder %s16, 0
      %p176 = por %p174, %p175
      %p177 = scmp.ne.s32.totalorder %s169, %s171
      %p178 = scmp.eq.s32.totalorder %s21, 1
      %p179 = por %p177, %p178
      %p180 = scmp.ne.s32.totalorder %s171, %s172
      %p181 = scmp.eq.s32.totalorder %s21, 0
      %p182 = por %p180, %p181
      %p183 = scmp.ne.s32.totalorder %s171, %s172
      %p184 = scmp.eq.s32.totalorder %s22, 1
      %p185 = por %p183, %p184
      %p187 = scmp.ne.s32.totalorder %s172, %s186
      %p188 = scmp.eq.s32.totalorder %s22, 0
      %p189 = por %p187, %p188
      %s190 = ssub.s32 %s23, %s35
      %s191 = ssub.s32 %s24, %s31
      %s192 = sor.u32 %s190, %s191
      %p193 = scmp.eq.s32.totalorder %s192, 0
      %s195 = sadd.s32 %s194, 1
      %s196 = scalar_select %p193, %s194, %s195
      %p199 = pneg %p193
      %p200 = scmp.eq.s32.totalorder %s16, 1
      %p201 = por %p199, %p200
      %p202 = scmp.ne.s32.totalorder %s194, %s197
      %p203 = scmp.eq.s32.totalorder %s16, 0
      %p204 = por %p202, %p203
      %p205 = scmp.ne.s32.totalorder %s194, %s197
      %p206 = scmp.eq.s32.totalorder %s21, 1
      %p207 = por %p205, %p206
      %p208 = scmp.ne.s32.totalorder %s197, %s198
      %p209 = scmp.eq.s32.totalorder %s21, 0
      %p210 = por %p208, %p209
      %p211 = scmp.ne.s32.totalorder %s197, %s198
      %p212 = scmp.eq.s32.totalorder %s22, 1
      %p213 = por %p211, %p212
      %p215 = scmp.ne.s32.totalorder %s198, %s214
      %p216 = scmp.eq.s32.totalorder %s22, 0
      %p217 = por %p215, %p216
      %p218 = scmp.le.s32.totalorder 1, %s16
      %p219 = scmp.lt.s32.totalorder %s16, 3
      %p220 = pnand %p218, %p219
      %p221 = pneg %p220
      // Predicated region
      $region9: #{depthnet_forward.1} parent=5 // pred_check
        _
      $region10: #{depthnet_forward.1} parent=5 // pred_check_branch
        %223 = sbr.rel (%p220) target = $region12
      $region11: #{depthnet_forward.1} parent=5 // pred_region
        %s224 = ssub.s32 %s16, 1
        // Predicated region
        $region13: #{depthnet_forward.1} parent=11 // pred_check
          %p225 = pneg %p77
        $region14: #{depthnet_forward.1} parent=11 // pred_check_branch
          %227 = sbr.rel (%p225) target = $region16
        $region15: #{depthnet_forward.1} parent=11 // pred_region
          _
        $region16: #{depthnet_forward.1} parent=11 // pred_fallthru
          _
        // Predicated region
        $region17: #{depthnet_forward.1} parent=11 // pred_check
          %p228 = pneg %p98
        $region18: #{depthnet_forward.1} parent=11 // pred_check_branch
          %230 = sbr.rel (%p228) target = $region20
        $region19: #{depthnet_forward.1} parent=11 // pred_region
          _
        $region20: #{depthnet_forward.1} parent=11 // pred_fallthru
          _
        // Predicated region
        $region21: #{depthnet_forward.1} parent=11 // pred_check
          %p231 = pneg %p119
        $region22: #{depthnet_forward.1} parent=11 // pred_check_branch
          %233 = sbr.rel (%p231) target = $region24
        $region23: #{depthnet_forward.1} parent=11 // pred_region
          _
        $region24: #{depthnet_forward.1} parent=11 // pred_fallthru
          _
        // Predicated region
        $region25: #{depthnet_forward.1} parent=11 // pred_check
          %p234 = pneg %p140
        $region26: #{depthnet_forward.1} parent=11 // pred_check_branch
          %236 = sbr.rel (%p234) target = $region28
        $region27: #{depthnet_forward.1} parent=11 // pred_region
          _
        $region28: #{depthnet_forward.1} parent=11 // pred_fallthru
          _
        // Predicated region
        $region29: #{depthnet_forward.1} parent=11 // pred_check
          %p237 = pneg %p161
        $region30: #{depthnet_forward.1} parent=11 // pred_check_branch
          %239 = sbr.rel (%p237) target = $region32
        $region31: #{depthnet_forward.1} parent=11 // pred_region
          _
        $region32: #{depthnet_forward.1} parent=11 // pred_fallthru
          _
        // Predicated region
        $region33: #{depthnet_forward.1} parent=11 // pred_check
          %p240 = pneg %p182
        $region34: #{depthnet_forward.1} parent=11 // pred_check_branch
          %242 = sbr.rel (%p240) target = $region36
        $region35: #{depthnet_forward.1} parent=11 // pred_region
          _
        $region36: #{depthnet_forward.1} parent=11 // pred_fallthru
          _
      $region12: #{depthnet_forward.1} parent=5 // pred_fallthru
        _
      %p243 = scmp.lt.s32.totalorder %s16, 2
      // Predicated region
      $region37: #{depthnet_forward.1} parent=5 // pred_check
        %p244 = pneg %p243
      $region38: #{depthnet_forward.1} parent=5 // pred_check_branch
        %246 = sbr.rel (%p244) target = $region40
      $region39: #{depthnet_forward.1} parent=5 // pred_region
        // Predicated region
        $region41: #{depthnet_forward.1} parent=39 // pred_check
          %p247 = pneg %p50
        $region42: #{depthnet_forward.1} parent=39 // pred_check_branch
          %249 = sbr.rel (%p247) target = $region44
        $region43: #{depthnet_forward.1} parent=39 // pred_region
          %s250 = smul.u32 2, %s24
          %p251 = scmp.lt.s32.totalorder %s23, 1
          %s252 = scalar_select %p251, %s23, 1
          %p253 = scmp.lt.s32.totalorder %s250, 1
          %s254 = scalar_select %p253, %s250, 1
          %s255 = smul.addr %s252, 8
          %s256 = sadd.s32 %s254, %s255
          %s257 = smul.addr %s256, 8
          %s258 = scalar_lea.vmem %s0, %s257
          %s259 = smul.u32 2, %s24
        $region44: #{depthnet_forward.1} parent=39 // pred_fallthru
          _
      $region40: #{depthnet_forward.1} parent=5 // pred_fallthru
        _
      %p260 = scmp.le.s32.totalorder 1, %s16
      %p261 = scmp.lt.s32.totalorder %s16, 3
      %p262 = pnand %p260, %p261
      %p263 = pneg %p262
      // Predicated region
      $region45: #{depthnet_forward.1} parent=5 // pred_check
        _
      $region46: #{depthnet_forward.1} parent=5 // pred_check_branch
        %265 = sbr.rel (%p262) target = $region48
      $region47: #{depthnet_forward.1} parent=5 // pred_region
        %s266 = ssub.s32 %s16, 1
        %s267 = smul.u32 2, %s26
        %p268 = scmp.lt.s32.totalorder %s25, 1
        %s269 = scalar_select %p268, %s25, 1
        %p270 = scmp.lt.s32.totalorder %s267, 1
        %s271 = scalar_select %p270, %s267, 1
        %s272 = smul.addr %s269, 8
        %s273 = sadd.s32 %s271, %s272
        %s274 = smul.addr %s273, 8
        %s275 = scalar_lea.vmem %s0, %s274
        %p276 = pneg %p56
        %p277 = pneg %p53
        %p278 = pneg %p77
        %p279 = pneg %p74
        %p280 = pneg %p98
        %p281 = pneg %p95
        %p282 = pneg %p119
        %p283 = pneg %p116
        %p284 = pneg %p140
        %p285 = pneg %p137
        %p286 = pneg %p161
        %p287 = pneg %p158
        %p288 = pneg %p182
        %p289 = pneg %p179
        %p290 = pneg %p210
        %p291 = pneg %p207
        %s292 = sand.u32 %s197, 1
        %s293 = scalar_lea.sflag [#allocation3], %s292
        %s294 = sand.u32 %s197, 1
        %s295 = smul.addr %s294, 16
        %s296 = scalar_lea.vmem [#allocation2], %s295
        %s297 = smul.u32 2, %s26
        %p298 = scmp.lt.s32.totalorder %s25, 1
        %s299 = scalar_select %p298, %s25, 1
        %p300 = scmp.lt.s32.totalorder %s297, 1
        %s301 = scalar_select %p300, %s297, 1
        %s302 = smul.addr %s299, 8
        %s303 = sadd.s32 %s301, %s302
        %s304 = smul.addr %s303, 8
        %s305 = scalar_lea.vmem %s0, %s304
        %s306 = smul.u32 2, %s26
        %s307 = smul.u32 2, %s26
        %v308 = vld [vmem:[%s305] sm:$0xff]
        %v309 = vld [vmem:[%s305 + $0x8] sm:$0xff]
        %v310 = vld [vmem:[%s305 + $0x10] sm:$0xff]
        %v311 = vld [vmem:[%s305 + $0x18] sm:$0xff]
        %v312 = vld [vmem:[%s305 + $0x20] sm:$0xff]
        %v313 = vld [vmem:[%s305 + $0x28] sm:$0xff]
        %v314 = vld [vmem:[%s305 + $0x30] sm:$0xff]
        %v315 = vld [vmem:[%s305 + $0x38] sm:$0xff]
        %v316 = vld [vmem:[%s1] sm:$0xff]
        %v317 = vld [vmem:[%s1 + $0x8] sm:$0xff]
        %v318 = vld [vmem:[%s1 + $0x10] sm:$0xff]
        %v319 = vld [vmem:[%s1 + $0x18] sm:$0xff]
        %v320 = vld [vmem:[%s2] sm:$0xff]
        %v321 = vld [vmem:[%s2 + $0x8] sm:$0xff]
        %v322 = vld [vmem:[%s2 + $0x10] sm:$0xff]
        %v323 = vld [vmem:[%s2 + $0x18] sm:$0xff]
        %325 = vset.pattern.permute.xlu0 0
        %326 = vperm.xlu0 %325, %v320
        %v327 = vpop.permute.xlu0 %326
        %330 = vset.pattern.permute.xlu0 0
        %331 = vperm.xlu0 %330, %v321
        %v332 = vpop.permute.xlu0 %331
        %335 = vset.pattern.permute.xlu0 0
        %336 = vperm.xlu0 %335, %v322
        %v337 = vpop.permute.xlu0 %336
        %340 = vset.pattern.permute.xlu0 0
        %341 = vperm.xlu0 %340, %v323
        %v342 = vpop.permute.xlu0 %341
        %vm344 = vcmask 261120
        %v346 = vsel %vm344, %v316, 0
        %v349 = vsel %vm344, %v317, 0
        %v352 = vsel %vm344, %v318, 0
        %v355 = vsel %vm344, %v319, 0
        %357 = vmatprep.subr.mxu0 %v309
        %358 = vmatpush1.msra.mxu0 %v308
        %359 = vmatprep.subr.mxu0 %v311
        %360 = vmatpush1.msra.mxu0 %v310
        %361 = vmatprep.subr.mxu0 %v313
        %362 = vmatpush1.msra.mxu0 %v312
        %363 = vmatprep.subr.mxu0 %v315
        %364 = vmatpush1.msra.mxu0 %v314
        %365 = vmatprep.subr.mxu0 0.0
        %366 = vmatpush1.msra.mxu0 0.0
        %367 = vmatprep.subr.mxu0 0.0
        %368 = vmatpush1.msra.mxu0 0.0
        %369 = vmatprep.subr.mxu0 0.0
        %370 = vmatpush1.msra.mxu0 0.0
        %371 = vmatprep.subr.mxu0 0.0
        %372 = vmatpush1.msra.mxu0 0.0
        %373 = vmatprep.subr.mxu0 0.0
        %374 = vmatpush1.msra.mxu0 0.0
        %375 = vmatprep.subr.mxu0 0.0
        %376 = vmatpush1.msra.mxu0 0.0
        %377 = vmatprep.subr.mxu0 0.0
        %378 = vmatpush1.msra.mxu0 0.0
        %379 = vmatprep.subr.mxu0 0.0
        %380 = vmatpush1.msra.mxu0 0.0
        %381 = vmatprep.subr.mxu0 0.0
        %382 = vmatpush1.msra.mxu0 0.0
        %383 = vmatprep.subr.mxu0 0.0
        %384 = vmatpush1.msra.mxu0 0.0
        %385 = vmatprep.subr.mxu0 0.0
        %386 = vmatpush1.msra.mxu0 0.0
        %387 = vmatprep.subr.mxu0 0.0
        %388 = vmatpush1.msra.mxu0 0.0
        %389 = vmatprep.subr.mxu0 0.0
        %390 = vmatpush1.msra.mxu0 0.0
        %391 = vmatprep.subr.mxu0 0.0
        %392 = vmatpush1.msra.mxu0 0.0
        %393 = vmatprep.subr.mxu0 0.0
        %394 = vmatpush1.msra.mxu0 0.0
        %395 = vmatprep.subr.mxu0 0.0
        %396 = vmatpush1.msra.mxu0 0.0
        %397 = vmatprep.subr.mxu0 0.0
        %398 = vmatpush1.msra.mxu0 0.0
        %399 = vmatprep.subr.mxu0 0.0
        %400 = vmatpush1.msra.mxu0 0.0
        %401 = vmatprep.subr.mxu0 0.0
        %402 = vmatpush1.msra.mxu0 0.0
        %403 = vmatprep.subr.mxu0 0.0
        %404 = vmatpush1.msra.mxu0 0.0
        %405 = vmatprep.subr.mxu0 0.0
        %406 = vmatpush1.msra.mxu0 0.0
        %407 = vmatprep.subr.mxu0 0.0
        %408 = vmatpush1.msra.mxu0 0.0
        %409 = vmatprep.subr.mxu0 0.0
        %410 = vmatpush1.msra.mxu0 0.0
        %411 = vmatprep.subr.mxu0 0.0
        %412 = vmatpush1.msra.mxu0 0.0
        %413 = vmatprep.subr.mxu0 0.0
        %414 = vmatpush1.msra.mxu0 0.0
        %415 = vmatprep.subr.mxu0 0.0
        %416 = vmatpush1.msra.mxu0 0.0
        %417 = vmatprep.subr.mxu0 0.0
        %418 = vmatpush1.msra.mxu0 0.0
        %419 = vmatprep.subr.mxu0 0.0
        %420 = vmatpush1.msra.mxu0 0.0
        %421 = vmatprep.mubr.f32.mxu0 0.0
        %422 = vmatmul.mubr.f32.gmra.mrb[0].mxu0 %v346
        %v423 = vpop.f32.mrb[0].mxu0
        %v424 = vadd.f32 %v327, %v423
        %v425 = vpop.f32.mrb[0].mxu0
        %v426 = vadd.f32 %v327, %v425
        %427 = vmatprep.mubr.f32.mxu0 0.0
        %428 = vmatmul.mubr.f32.gmra.mrb[0].mxu0 %v349
        %v429 = vpop.f32.mrb[0].mxu0
        %v430 = vadd.f32 %v332, %v429
        %v431 = vpop.f32.mrb[0].mxu0
        %v432 = vadd.f32 %v332, %v431
        %433 = vmatprep.mubr.f32.mxu0 0.0
        %434 = vmatmul.mubr.f32.gmra.mrb[0].mxu0 %v352
        %v435 = vpop.f32.mrb[0].mxu0
        %v436 = vadd.f32 %v337, %v435
        %v437 = vpop.f32.mrb[0].mxu0
        %v438 = vadd.f32 %v337, %v437
        %439 = vmatprep.mubr.f32.mxu0 0.0
        %440 = vmatmul.mubr.f32.gmra.mrb[0].mxu0 %v355
        %v441 = vpop.f32.mrb[0].mxu0
        %v442 = vadd.f32 %v342, %v441
        %v443 = vpop.f32.mrb[0].mxu0
        %v444 = vadd.f32 %v342, %v443
        %445 = vdwg.mxu0
        %v446 = vmax.f32 %v424, 0.0
        %v447 = vmax.f32 %v426, 0.0
        %v448 = vmax.f32 %v430, 0.0
        %v449 = vmax.f32 %v432, 0.0
        %v450 = vmax.f32 %v436, 0.0
        %v451 = vmax.f32 %v438, 0.0
        %v452 = vmax.f32 %v442, 0.0
        %v453 = vmax.f32 %v444, 0.0
        %v454 = vld [vmem:[%s3] sm:$0xff]
        %v455 = vld [vmem:[%s3 + $0x8] sm:$0xff]
        %v456 = vld [vmem:[%s3 + $0x10] sm:$0xff]
        %v457 = vld [vmem:[%s3 + $0x18] sm:$0xff]
        %v458 = vld [vmem:[%s3 + $0x20] sm:$0xff]
        %v459 = vld [vmem:[%s3 + $0x28] sm:$0xff]
        %v460 = vld [vmem:[%s3 + $0x30] sm:$0xff]
        %v461 = vld [vmem:[%s3 + $0x38] sm:$0xff]
        %v462 = vld [vmem:[%s4] sm:$0xff]
        %v463 = vld [vmem:[%s4 + $0x8] sm:$0xff]
        %v464 = vld [vmem:[%s4 + $0x10] sm:$0xff]
        %v465 = vld [vmem:[%s4 + $0x18] sm:$0xff]
        %v466 = vld [vmem:[%s4 + $0x20] sm:$0xff]
        %v467 = vld [vmem:[%s4 + $0x28] sm:$0xff]
        %v468 = vld [vmem:[%s4 + $0x30] sm:$0xff]
        %v469 = vld [vmem:[%s4 + $0x38] sm:$0xff]
        %471 = vset.pattern.permute.xlu0 0
        %472 = vperm.xlu0 %471, %v462
        %v473 = vpop.permute.xlu0 %472
        %476 = vset.pattern.permute.xlu0 0
        %477 = vperm.xlu0 %476, %v463
        %v478 = vpop.permute.xlu0 %477
        %481 = vset.pattern.permute.xlu0 0
        %482 = vperm.xlu0 %481, %v464
        %v483 = vpop.permute.xlu0 %482
        %486 = vset.pattern.permute.xlu0 0
        %487 = vperm.xlu0 %486, %v465
        %v488 = vpop.permute.xlu0 %487
        %491 = vset.pattern.permute.xlu0 0
        %492 = vperm.xlu0 %491, %v466
        %v493 = vpop.permute.xlu0 %492
        %496 = vset.pattern.permute.xlu0 0
        %497 = vperm.xlu0 %496, %v467
        %v498 = vpop.permute.xlu0 %497
        %501 = vset.pattern.permute.xlu0 0
        %502 = vperm.xlu0 %501, %v468
        %v503 = vpop.permute.xlu0 %502
        %506 = vset.pattern.permute.xlu0 0
        %507 = vperm.xlu0 %506, %v469
        %v508 = vpop.permute.xlu0 %507
        %v511 = vsel %vm344, %v454, 0
        %v514 = vsel %vm344, %v455, 0
        %v517 = vsel %vm344, %v456, 0
        %v520 = vsel %vm344, %v457, 0
        %v523 = vsel %vm344, %v458, 0
        %v526 = vsel %vm344, %v459, 0
        %v529 = vsel %vm344, %v460, 0
        %v532 = vsel %vm344, %v461, 0
        %534 = vmatprep.subr.mxu0 %v447
        %535 = vmatpush1.msra.mxu0 %v446
        %536 = vmatprep.subr.mxu0 %v449
        %537 = vmatpush1.msra.mxu0 %v448
        %538 = vmatprep.subr.mxu0 %v451
        %539 = vmatpush1.msra.mxu0 %v450
        %540 = vmatprep.subr.mxu0 %v453
        %541 = vmatpush1.msra.mxu0 %v452
        %542 = vmatprep.subr.mxu0 0.0
        %543 = vmatpush1.msra.mxu0 0.0
        %544 = vmatprep.subr.mxu0 0.0
        %545 = vmatpush1.msra.mxu0 0.0
        %546 = vmatprep.subr.mxu0 0.0
        %547 = vmatpush1.msra.mxu0 0.0
        %548 = vmatprep.subr.mxu0 0.0
        %549 = vmatpush1.msra.mxu0 0.0
        %550 = vmatprep.subr.mxu0 0.0
        %551 = vmatpush1.msra.mxu0 0.0
        %552 = vmatprep.subr.mxu0 0.0
        %553 = vmatpush1.msra.mxu0 0.0
        %554 = vmatprep.subr.mxu0 0.0
        %555 = vmatpush1.msra.mxu0 0.0
        %556 = vmatprep.subr.mxu0 0.0
        %557 = vmatpush1.msra.mxu0 0.0
        %558 = vmatprep.subr.mxu0 0.0
        %559 = vmatpush1.msra.mxu0 0.0
        %560 = vmatprep.subr.mxu0 0.0
        %561 = vmatpush1.msra.mxu0 0.0
        %562 = vmatprep.subr.mxu0 0.0
        %563 = vmatpush1.msra.mxu0 0.0
        %564 = vmatprep.subr.mxu0 0.0
        %565 = vmatpush1.msra.mxu0 0.0
        %566 = vmatprep.subr.mxu0 0.0
        %567 = vmatpush1.msra.mxu0 0.0
        %568 = vmatprep.subr.mxu0 0.0
        %569 = vmatpush1.msra.mxu0 0.0
        %570 = vmatprep.subr.mxu0 0.0
        %571 = vmatpush1.msra.mxu0 0.0
        %572 = vmatprep.subr.mxu0 0.0
        %573 = vmatpush1.msra.mxu0 0.0
        %574 = vmatprep.subr.mxu0 0.0
        %575 = vmatpush1.msra.mxu0 0.0
        %576 = vmatprep.subr.mxu0 0.0
        %577 = vmatpush1.msra.mxu0 0.0
        %578 = vmatprep.subr.mxu0 0.0
        %579 = vmatpush1.msra.mxu0 0.0
        %580 = vmatprep.subr.mxu0 0.0
        %581 = vmatpush1.msra.mxu0 0.0
        %582 = vmatprep.subr.mxu0 0.0
        %583 = vmatpush1.msra.mxu0 0.0
        %584 = vmatprep.subr.mxu0 0.0
        %585 = vmatpush1.msra.mxu0 0.0
        %586 = vmatprep.subr.mxu0 0.0
        %587 = vmatpush1.msra.mxu0 0.0
        %588 = vmatprep.subr.mxu0 0.0
        %589 = vmatpush1.msra.mxu0 0.0
        %590 = vmatprep.subr.mxu0 0.0
        %591 = vmatpush1.msra.mxu0 0.0
        %592 = vmatprep.subr.mxu0 0.0
        %593 = vmatpush1.msra.mxu0 0.0
        %594 = vmatprep.subr.mxu0 0.0
        %595 = vmatpush1.msra.mxu0 0.0
        %596 = vmatprep.subr.mxu0 0.0
        %597 = vmatpush1.msra.mxu0 0.0
        %598 = vmatprep.mubr.f32.mxu0 0.0
        %599 = vmatmul.mubr.f32.gmra.mrb[0].mxu0 %v511
        %v600 = vpop.f32.mrb[0].mxu0
        %v601 = vadd.f32 %v473, %v600
        %v602 = vpop.f32.mrb[0].mxu0
        %v603 = vadd.f32 %v473, %v602
        %604 = vmatprep.mubr.f32.mxu0 0.0
        %605 = vmatmul.mubr.f32.gmra.mrb[0].mxu0 %v514
        %v606 = vpop.f32.mrb[0].mxu0
        %v607 = vadd.f32 %v478, %v606
        %v608 = vpop.f32.mrb[0].mxu0
        %v609 = vadd.f32 %v478, %v608
        %610 = vmatprep.mubr.f32.mxu0 0.0
        %611 = vmatmul.mubr.f32.gmra.mrb[0].mxu0 %v517
        %v612 = vpop.f32.mrb[0].mxu0
        %v613 = vadd.f32 %v483, %v612
        %v614 = vpop.f32.mrb[0].mxu0
        %v615 = vadd.f32 %v483, %v614
        %616 = vmatprep.mubr.f32.mxu0 0.0
        %617 = vmatmul.mubr.f32.gmra.mrb[0].mxu0 %v520
        %v618 = vpop.f32.mrb[0].mxu0
        %v619 = vadd.f32 %v488, %v618
        %v620 = vpop.f32.mrb[0].mxu0
        %v621 = vadd.f32 %v488, %v620
        %622 = vmatprep.mubr.f32.mxu0 0.0
        %623 = vmatmul.mubr.f32.gmra.mrb[0].mxu0 %v523
        %v624 = vpop.f32.mrb[0].mxu0
        %v625 = vadd.f32 %v493, %v624
        %v626 = vpop.f32.mrb[0].mxu0
        %v627 = vadd.f32 %v493, %v626
        %628 = vmatprep.mubr.f32.mxu0 0.0
        %629 = vmatmul.mubr.f32.gmra.mrb[0].mxu0 %v526
        %v630 = vpop.f32.mrb[0].mxu0
        %v631 = vadd.f32 %v498, %v630
        %v632 = vpop.f32.mrb[0].mxu0
        %v633 = vadd.f32 %v498, %v632
        %634 = vmatprep.mubr.f32.mxu0 0.0
        %635 = vmatmul.mubr.f32.gmra.mrb[0].mxu0 %v529
        %v636 = vpop.f32.mrb[0].mxu0
        %v637 = vadd.f32 %v503, %v636
        %v638 = vpop.f32.mrb[0].mxu0
        %v639 = vadd.f32 %v503, %v638
        %640 = vmatprep.mubr.f32.mxu0 0.0
        %641 = vmatmul.mubr.f32.gmra.mrb[0].mxu0 %v532
        %v642 = vpop.f32.mrb[0].mxu0
        %v643 = vadd.f32 %v508, %v642
        %v644 = vpop.f32.mrb[0].mxu0
        %v645 = vadd.f32 %v508, %v644
        %646 = vdwg.mxu0
        %v647 = vmax.f32 %v601, 0.0
        %v648 = vmax.f32 %v603, 0.0
        %v649 = vmax.f32 %v607, 0.0
        %v650 = vmax.f32 %v609, 0.0
        %v651 = vmax.f32 %v613, 0.0
        %v652 = vmax.f32 %v615, 0.0
        %v653 = vmax.f32 %v619, 0.0
        %v654 = vmax.f32 %v621, 0.0
        %v655 = vmax.f32 %v625, 0.0
        %v656 = vmax.f32 %v627, 0.0
        %v657 = vmax.f32 %v631, 0.0
        %v658 = vmax.f32 %v633, 0.0
        %v659 = vmax.f32 %v637, 0.0
        %v660 = vmax.f32 %v639, 0.0
        %v661 = vmax.f32 %v643, 0.0
        %v662 = vmax.f32 %v645, 0.0
        %v663 = vld [vmem:[%s5] sm:$0xff]
        %v664 = vld [vmem:[%s6] sm:$0xff]
        %666 = vset.pattern.permute.xlu0 0
        %667 = vperm.xlu0 %666, %v664
        %v668 = vpop.permute.xlu0 %667
        %vm670 = vcmask 523264
        %v672 = vsel %vm670, %v663, 0
        %674 = vmatprep.subr.mxu0 %v648
        %675 = vmatpush1.msra.mxu0 %v647
        %676 = vmatprep.subr.mxu0 %v650
        %677 = vmatpush1.msra.mxu0 %v649
        %678 = vmatprep.subr.mxu0 %v652
        %679 = vmatpush1.msra.mxu0 %v651
        %680 = vmatprep.subr.mxu0 %v654
        %681 = vmatpush1.msra.mxu0 %v653
        %682 = vmatprep.subr.mxu0 %v656
        %683 = vmatpush1.msra.mxu0 %v655
        %684 = vmatprep.subr.mxu0 %v658
        %685 = vmatpush1.msra.mxu0 %v657
        %686 = vmatprep.subr.mxu0 %v660
        %687 = vmatpush1.msra.mxu0 %v659
        %688 = vmatprep.subr.mxu0 %v662
        %689 = vmatpush1.msra.mxu0 %v661
        %690 = vmatprep.subr.mxu0 0.0
        %691 = vmatpush1.msra.mxu0 0.0
        %692 = vmatprep.subr.mxu0 0.0
        %693 = vmatpush1.msra.mxu0 0.0
        %694 = vmatprep.subr.mxu0 0.0
        %695 = vmatpush1.msra.mxu0 0.0
        %696 = vmatprep.subr.mxu0 0.0
        %697 = vmatpush1.msra.mxu0 0.0
        %698 = vmatprep.subr.mxu0 0.0
        %699 = vmatpush1.msra.mxu0 0.0
        %700 = vmatprep.subr.mxu0 0.0
        %701 = vmatpush1.msra.mxu0 0.0
        %702 = vmatprep.subr.mxu0 0.0
        %703 = vmatpush1.msra.mxu0 0.0
        %704 = vmatprep.subr.mxu0 0.0
        %705 = vmatpush1.msra.mxu0 0.0
        %706 = vmatprep.subr.mxu0 0.0
        %707 = vmatpush1.msra.mxu0 0.0
        %708 = vmatprep.subr.mxu0 0.0
        %709 = vmatpush1.msra.mxu0 0.0
        %710 = vmatprep.subr.mxu0 0.0
        %711 = vmatpush1.msra.mxu0 0.0
        %712 = vmatprep.subr.mxu0 0.0
        %713 = vmatpush1.msra.mxu0 0.0
        %714 = vmatprep.subr.mxu0 0.0
        %715 = vmatpush1.msra.mxu0 0.0
        %716 = vmatprep.subr.mxu0 0.0
        %717 = vmatpush1.msra.mxu0 0.0
        %718 = vmatprep.subr.mxu0 0.0
        %719 = vmatpush1.msra.mxu0 0.0
        %720 = vmatprep.subr.mxu0 0.0
        %721 = vmatpush1.msra.mxu0 0.0
        %722 = vmatprep.subr.mxu0 0.0
        %723 = vmatpush1.msra.mxu0 0.0
        %724 = vmatprep.subr.mxu0 0.0
        %725 = vmatpush1.msra.mxu0 0.0
        %726 = vmatprep.subr.mxu0 0.0
        %727 = vmatpush1.msra.mxu0 0.0
        %728 = vmatprep.subr.mxu0 0.0
        %729 = vmatpush1.msra.mxu0 0.0
        %730 = vmatprep.subr.mxu0 0.0
        %731 = vmatpush1.msra.mxu0 0.0
        %732 = vmatprep.subr.mxu0 0.0
        %733 = vmatpush1.msra.mxu0 0.0
        %734 = vmatprep.subr.mxu0 0.0
        %735 = vmatpush1.msra.mxu0 0.0
        %736 = vmatprep.subr.mxu0 0.0
        %737 = vmatpush1.msra.mxu0 0.0
        %738 = vmatprep.mubr.f32.mxu0 0.0
        %739 = vmatmul.mubr.f32.gmra.mrb[0].mxu0 %v672
        %v740 = vpop.f32.mrb[0].mxu0
        %v741 = vadd.f32 %v668, %v740
        %v742 = vpop.f32.mrb[0].mxu0
        %v743 = vadd.f32 %v668, %v742
        %744 = vdwg.mxu0
        %v745 = vmax.f32 %v741, 0.0
        %v746 = vmax.f32 %v743, 0.0
        %747 = vst [vmem:[%s296] sm:$0xff] %v745
        %748 = vst [vmem:[%s296 + $0x8] sm:$0xff] %v746
        %s749 = sand.u32 %s197, 1
        %s750 = scalar_lea.sflag [#allocation3], %s749
        %s751 = sand.u32 %s197, 1
        %s752 = smul.addr %s751, 16
        %s753 = scalar_lea.vmem [#allocation2], %s752
        // Predicated region
        $region49: #{depthnet_forward.1} parent=47 // pred_check
          %p754 = pneg %p207
        $region50: #{depthnet_forward.1} parent=47 // pred_check_branch
          %756 = sbr.rel (%p754) target = $region52
        $region51: #{depthnet_forward.1} parent=47 // pred_region
          %s757 = smul.u32 2, %s26
          %s759 = ssub.s32 256, 256
          %760 = vsyncadd %s750, %s759
          %s761 = smul.addr %s25, 2
          %s762 = sadd.s32 %s757, %s761
          %s763 = smul.addr %s762, 128
          %s764 = scalar_lea.hbm %s7, %s763
          %s766 = sshll.u32 %s753, 4
          %s767 = int_to_ptr.vmem [resolvable:$true] %s766
          %769 = dma.vmem_to_hbm [thread:$0]  %s767, 256, %s764, %s750
        $region52: #{depthnet_forward.1} parent=47 // pred_fallthru
          _
      $region48: #{depthnet_forward.1} parent=5 // pred_fallthru
        _
      %p770 = scmp.le.s32.totalorder 2, %s16
      // Predicated region
      $region53: #{depthnet_forward.1} parent=5 // pred_check
        %p771 = pneg %p770
      $region54: #{depthnet_forward.1} parent=5 // pred_check_branch
        %773 = sbr.rel (%p771) target = $region56
      $region55: #{depthnet_forward.1} parent=5 // pred_region
        %s774 = ssub.s32 %s16, 2
        // Predicated region
        $region57: #{depthnet_forward.1} parent=55 // pred_check
          %p775 = pneg %p213
        $region58: #{depthnet_forward.1} parent=55 // pred_check_branch
          %777 = sbr.rel (%p775) target = $region60
        $region59: #{depthnet_forward.1} parent=55 // pred_region
          %s778 = sand.u32 %s198, 1
          %s779 = scalar_lea.sflag [#allocation3], %s778
          %s780 = sand.u32 %s198, 1
          %s781 = smul.addr %s780, 16
          %s782 = scalar_lea.vmem [#allocation2], %s781
          %783 = dma.done %s779, 256
        $region60: #{depthnet_forward.1} parent=55 // pred_fallthru
          _
      $region56: #{depthnet_forward.1} parent=5 // pred_fallthru
        _
    $region6: #{depthnet_forward.1} parent=1 // loop_footer
      %s20 = sadd.s32 1, %s16
    $region7: #{depthnet_forward.1} parent=1 // loop_footer_branch
      %15 = sbr.rel target = $region3
    $region8: #{depthnet_forward.1} parent=1 // loop_exit
      _
    %784 = vsyncpa [#allocation3], 1
    %s785 = scalar_lea.sflag [#allocation3], 1
    %786 = vsyncpa %s785, 1

</llo_original>
